<compile_context>
chip_gen: v7x
topology: tpu7x:2x2x1
jax: 0.10.0
libtpu: 0.0.40
codegen_flags: <defaults>
</compile_context>

<pallas_src>
import functools
import math

import jax
import jax.numpy as jnp
from jax.experimental import pallas as pl
from jax.experimental.pallas import tpu as pltpu

_LOG_2PI = math.log(2.0 * math.pi)


def _round_up(x, m):
    return (x + m - 1) // m * m


# ---------------------------------------------------------------------------
# Pallas kernel: full PPOActor forward for one batch tile
# ---------------------------------------------------------------------------
def ppo_actor_kernel(
    x_ref,            # (TB, S)   state tile (f32)
    noise_ref,        # (TB, A)   std-normal noise (f32)
    w1_ref, b1_ref,   # (S, H1) matmul dtype, (1, H1) f32
    w2_ref, b2_ref,   # (H1, H2), (1, H2)
    w3_ref, b3_ref,   # (H2, H3), (1, H3)
    w4_ref, b4_ref,   # (H3, A),  (1, A)
    scale_ref,        # (1, A)    softplus(std), f32
    logc_ref,         # (1, 1)    -sum(log scale) - 0.5*A*log(2*pi)
    a_ref,            # (TB, A)   out: action
    mean_ref,         # (TB, A)   out: mean
    lp_ref,           # (TB, 1)   out: log_prob
    *,
    matmul_dtype,
):
    def dot(a, w_ref):
        # weights already live in matmul_dtype (cast host-side, once)
        return jnp.dot(a.astype(matmul_dtype), w_ref[...],
                       preferred_element_type=jnp.float32)

    def elu(v):  # nn.ELU(alpha=1.0); clamp so the discarded branch can't overflow
        return jnp.where(v > 0, v, jnp.exp(jnp.minimum(v, 0.0)) - 1.0)

    x = x_ref[...]
    h = elu(dot(x, w1_ref) + b1_ref[...])
    h = elu(dot(h, w2_ref) + b2_ref[...])
    h = elu(dot(h, w3_ref) + b3_ref[...])

    mean = jnp.tanh(dot(h, w4_ref) + b4_ref[...])          # (TB, A)

    noise = noise_ref[...]                                  # (TB, A)
    action = mean + scale_ref[...] * noise                  # (TB, A)

    # log N(a; mean, scale) with a = mean + scale*noise, summed over A:
    #   sum(-0.5*noise^2) - sum(log scale) - 0.5*A*log(2*pi)
    lp = -0.5 * jnp.sum(noise * noise, axis=-1, keepdims=True) + logc_ref[...]

    a_ref[...] = action
    mean_ref[...] = mean
    lp_ref[...] = lp


# ---------------------------------------------------------------------------
# Wrapper
# ---------------------------------------------------------------------------
def ppo_actor_forward(state, params, noise, *, block_b=None,
                      matmul_dtype=jnp.bfloat16):
    """Runs the PPOActor forward pass in a Pallas kernel.

    Returns a dict {'a', 'log_prob', 'mean'} matching the PyTorch module
    (action sampled via the supplied standard-normal `noise`).
    """
    f32 = jnp.float32
    B, S = state.shape
    H1 = params["w1"].shape[1]
    H2 = params["w2"].shape[1]
    H3 = params["w3"].shape[1]
    A = params["w4"].shape[1]

    if B == 0:  # degenerate batch: nothing to launch
        z = jnp.zeros((0, A), f32)
        return {"a": z, "log_prob": jnp.zeros((0, 1), f32), "mean": z}

    # --- tile selection ------------------------------------------------------
    b8 = _round_up(B, 8)
    if block_b is None:
        if b8 <= 256:
            block_b = b8                                   # single small tile
        else:
            # big batch: amortize step overhead, but keep >=2 steps so both
            # v7x TensorCores get work on the "parallel" batch axis.
            block_b = min(1024, _round_up(-(-b8 // 2), 8))
    B_pad = _round_up(B, block_b)
    nb = B_pad // block_b

    # --- host-side prep (no-op copies are skipped) ---------------------------
    state_f = state if state.dtype == f32 else state.astype(f32)
    noise_f = noise if noise.dtype == f32 else noise.astype(f32)
    if B_pad != B:
        state_f = jnp.zeros((B_pad, S), f32).at[:B].set(state_f)
        noise_f = jnp.zeros((B_pad, A), f32).at[:B].set(noise_f)

    md = matmul_dtype
    w1 = params["w1"].astype(md); b1 = params["b1"].reshape(1, H1).astype(f32)
    w2 = params["w2"].astype(md); b2 = params["b2"].reshape(1, H2).astype(f32)
    w3 = params["w3"].astype(md); b3 = params["b3"].reshape(1, H3).astype(f32)
    w4 = params["w4"].astype(md); b4 = params["b4"].reshape(1, A).astype(f32)

    # std-only math hoisted out of the kernel (stable softplus, clamped log).
    scale = jax.nn.softplus(params["std"].reshape(1, A).astype(f32))
    scale = jnp.maximum(scale, jnp.float32(1e-30))
    logc = (-jnp.sum(jnp.log(scale)) - 0.5 * A * _LOG_2PI).reshape(1, 1)

    # --- specs ----------------------------------------------------------------
    def const(shape):   # parameters: same block every grid step -> VMEM resident
        return pl.BlockSpec(shape, lambda i: (0, 0))

    def stream(shape):  # per-batch-tile streaming
        return pl.BlockSpec(shape, lambda i: (i, 0))

    in_specs = [
        stream((block_b, S)),
        stream((block_b, A)),
        const((S, H1)), const((1, H1)),
        const((H1, H2)), const((1, H2)),
        const((H2, H3)), const((1, H3)),
        const((H3, A)), const((1, A)),
        const((1, A)),
        const((1, 1)),
    ]
    out_specs = [
        stream((block_b, A)),
        stream((block_b, A)),
        stream((block_b, 1)),
    ]
    out_shape = (
        jax.ShapeDtypeStruct((B_pad, A), f32),   # action
        jax.ShapeDtypeStruct((B_pad, A), f32),   # mean
        jax.ShapeDtypeStruct((B_pad, 1), f32),   # log_prob
    )

    itemsize = jnp.dtype(md).itemsize
    weight_bytes = itemsize * (S * H1 + H1 * H2 + H2 * H3 + H3 * A) \
        + 4 * (H1 + H2 + H3 + 2 * A + 1)
    cost = pl.CostEstimate(
        flops=2 * B_pad * (S * H1 + H1 * H2 + H2 * H3 + H3 * A),
        transcendentals=B_pad * (H1 + H2 + H3 + A),
        bytes_accessed=weight_bytes + 4 * B_pad * (S + A) + 4 * B_pad * (2 * A + 1),
    )

    kernel = functools.partial(ppo_actor_kernel, matmul_dtype=md)

    action, mean, log_prob = pl.pallas_call(
        kernel,
        out_shape=out_shape,
        grid=(nb,),
        in_specs=in_specs,
        out_specs=out_specs,
        compiler_params=pltpu.CompilerParams(
            dimension_semantics=("parallel",),
            vmem_limit_bytes=32 * 1024 * 1024,
        ),
        cost_estimate=cost,
    )(state_f, noise_f, w1, b1, w2, b2, w3, b3, w4, b4, scale, logc)

    if B_pad != B:
        action, mean, log_prob = action[:B], mean[:B], log_prob[:B]
    return {"a": action, "log_prob": log_prob, "mean": mean}


# ---------------------------------------------------------------------------
# Deterministic parameter construction (mimics nn.Linear shapes; std = zeros)
# ---------------------------------------------------------------------------
def init_params(key, state_dim, action_dim, hidden_units=(128, 64, 64)):
    dims = (state_dim,) + tuple(hidden_units) + (action_dim,)
    params = {}
    keys = jax.random.split(key, len(dims) - 1)
    for i, (d_in, d_out) in enumerate(zip(dims[:-1], dims[1:]), start=1):
        kw, kb = jax.random.split(keys[i - 1])
        bound = 1.0 / math.sqrt(d_in)   # PyTorch nn.Linear default init range
        params[f"w{i}"] = jax.random.uniform(
            kw, (d_in, d_out), jnp.float32, minval=-bound, maxval=bound
        )
        params[f"b{i}"] = jax.random.uniform(
            kb, (1, d_out), jnp.float32, minval=-bound, maxval=bound
        )
    params["std"] = jnp.zeros((1, action_dim), jnp.float32)  # nn.Parameter(zeros)
    return params


if __name__ == "__main__":
    batch = 8
    state_dim = 32
    action_dim = 8
    hidden_units = (128, 64, 64)

    key = jax.random.PRNGKey(0)
    k_param, k_state, k_noise = jax.random.split(key, 3)

    params = init_params(k_param, state_dim, action_dim, hidden_units)
    state = jax.random.normal(k_state, (batch, state_dim), jnp.float32)
    # Standard-normal noise drives dist.sample() (the action=None branch).
    # TODO(synk): torch.distributions RNG has no in-kernel equivalent; noise is
    # supplied host-side (could be fused with pltpu.prng_seed/prng_random_bits).
    noise = jax.random.normal(k_noise, (batch, action_dim), jnp.float32)

    # Pure-JAX reference (mirrors the PyTorch module).
    def ref_forward(s):
        def elu(x):
            return jnp.where(x > 0, x, jnp.exp(x) - 1.0)
        hp = jax.lax.Precision.HIGHEST
        h = elu(jnp.dot(s, params["w1"], precision=hp) + params["b1"])
        h = elu(jnp.dot(h, params["w2"], precision=hp) + params["b2"])
        h = elu(jnp.dot(h, params["w3"], precision=hp) + params["b3"])
        mean = jnp.tanh(jnp.dot(h, params["w4"], precision=hp) + params["b4"])
        scale = jax.nn.softplus(params["std"])
        action = mean + scale * noise
        lp = (
            -jnp.square(action - mean) / (2.0 * scale ** 2)
            - jnp.log(scale)
            - 0.5 * math.log(2.0 * math.pi)
        ).sum(-1, keepdims=True)
        return action, lp, mean

    a_ref, lp_ref, m_ref = ref_forward(state)

    # f32 matmul path: strict validation.
    out32 = ppo_actor_forward(state, params, noise, matmul_dtype=jnp.float32)
    jax.block_until_ready(out32)
    assert jnp.allclose(out32["a"], a_ref, atol=1e-4, rtol=1e-4)
    assert jnp.allclose(out32["log_prob"], lp_ref, atol=1e-4, rtol=1e-4)
    assert jnp.allclose(out32["mean"], m_ref, atol=1e-4, rtol=1e-4)

    # Default (bf16 matmuls, f32 elementwise): looser tolerance on mean/action;
    # log_prob depends only on noise/scale (f32), so it stays tight.
    out16 = ppo_actor_forward(state, params, noise)
    jax.block_until_ready(out16)
    assert jnp.allclose(out16["a"], a_ref, atol=5e-2, rtol=5e-2)
    assert jnp.allclose(out16["mean"], m_ref, atol=5e-2, rtol=5e-2)
    assert jnp.allclose(out16["log_prob"], lp_ref, atol=1e-4, rtol=1e-4)

    print("KERNEL_OK")
</pallas_src>

<mosaic_0001>
module attributes {stable_mosaic.version = 11 : i64} {
  func.func @ppo_actor_kernel(%arg0: i32, %arg1: memref<8x32xf32, #tpu.memory_space<vmem>>, %arg2: memref<8x8xf32, #tpu.memory_space<vmem>>, %arg3: memref<32x128xf32, #tpu.memory_space<vmem>>, %arg4: memref<1x128xf32, #tpu.memory_space<vmem>>, %arg5: memref<128x64xf32, #tpu.memory_space<vmem>>, %arg6: memref<1x64xf32, #tpu.memory_space<vmem>>, %arg7: memref<64x64xf32, #tpu.memory_space<vmem>>, %arg8: memref<1x64xf32, #tpu.memory_space<vmem>>, %arg9: memref<64x8xf32, #tpu.memory_space<vmem>>, %arg10: memref<1x8xf32, #tpu.memory_space<vmem>>, %arg11: memref<1x8xf32, #tpu.memory_space<vmem>>, %arg12: memref<1x1xf32, #tpu.memory_space<vmem>>, %arg13: memref<8x8xf32, #tpu.memory_space<vmem>>, %arg14: memref<8x8xf32, #tpu.memory_space<vmem>>, %arg15: memref<8x1xf32, #tpu.memory_space<vmem>>) attributes {dimension_semantics = [#tpu.dimension_semantics<parallel>], iteration_bounds = array<i64: 1>, scalar_prefetch = 0 : i64, scratch_operands = 0 : i64, tpu.core_type = #tpu.core_type<tc>, window_params = [{transform_indices = @transform_0, window_bounds = array<i64: 8, 32>}, {transform_indices = @transform_1, window_bounds = array<i64: 8, 8>}, {pipeline_mode = #tpu.pipeline_mode<synchronous>, transform_indices = @transform_2, window_bounds = array<i64: 32, 128>}, {pipeline_mode = #tpu.pipeline_mode<synchronous>, transform_indices = @transform_3, window_bounds = array<i64: 1, 128>}, {pipeline_mode = #tpu.pipeline_mode<synchronous>, transform_indices = @transform_4, window_bounds = array<i64: 128, 64>}, {pipeline_mode = #tpu.pipeline_mode<synchronous>, transform_indices = @transform_5, window_bounds = array<i64: 1, 64>}, {pipeline_mode = #tpu.pipeline_mode<synchronous>, transform_indices = @transform_6, window_bounds = array<i64: 64, 64>}, {pipeline_mode = #tpu.pipeline_mode<synchronous>, transform_indices = @transform_7, window_bounds = array<i64: 1, 64>}, {pipeline_mode = #tpu.pipeline_mode<synchronous>, transform_indices = @transform_8, window_bounds = array<i64: 64, 8>}, {pipeline_mode = #tpu.pipeline_mode<synchronous>, transform_indices = @transform_9, window_bounds = array<i64: 1, 8>}, {pipeline_mode = #tpu.pipeline_mode<synchronous>, transform_indices = @transform_10, window_bounds = array<i64: 1, 8>}, {pipeline_mode = #tpu.pipeline_mode<synchronous>, transform_indices = @transform_11, window_bounds = array<i64: 1, 1>}, {transform_indices = @transform_12, window_bounds = array<i64: 8, 8>}, {transform_indices = @transform_13, window_bounds = array<i64: 8, 8>}, {transform_indices = @transform_14, window_bounds = array<i64: 8, 1>}]} {
    %c0 = arith.constant 0 : index
    %c0_0 = arith.constant 0 : index
    %0 = vector.load %arg1[%c0, %c0_0] : memref<8x32xf32, #tpu.memory_space<vmem>>, vector<8x32xf32>
    %c0_1 = arith.constant 0 : index
    %c0_2 = arith.constant 0 : index
    %1 = vector.load %arg3[%c0_1, %c0_2] : memref<32x128xf32, #tpu.memory_space<vmem>>, vector<32x128xf32>
    %cst = arith.constant dense<0.000000e+00> : vector<8x128xf32>
    %2 = tpu.matmul %0, %1, %cst {dimension_numbers = #tpu.dot_dimension_numbers<[1], [0], [0], [1], [0, 0, 1, 1], [], []>} : vector<8x32xf32>, vector<32x128xf32>, vector<8x128xf32> -> vector<8x128xf32>
    %c0_3 = arith.constant 0 : index
    %c0_4 = arith.constant 0 : index
    %3 = vector.load %arg4[%c0_3, %c0_4] : memref<1x128xf32, #tpu.memory_space<vmem>>, vector<1x128xf32>
    %4 = vector.broadcast %3 : vector<1x128xf32> to vector<8x128xf32>
    %5 = arith.addf %2, %4 : vector<8x128xf32>
    %cst_5 = arith.constant 0.000000e+00 : f32
    %6 = vector.broadcast %cst_5 : f32 to vector<8x128xf32>
    %7 = arith.cmpf ogt, %5, %6 : vector<8x128xf32>
    %cst_6 = arith.constant 0.000000e+00 : f32
    %8 = vector.broadcast %cst_6 : f32 to vector<8x128xf32>
    %9 = arith.minimumf %5, %8 : vector<8x128xf32>
    %10 = math.exp %9 : vector<8x128xf32>
    %cst_7 = arith.constant 1.000000e+00 : f32
    %11 = vector.broadcast %cst_7 : f32 to vector<8x128xf32>
    %12 = arith.subf %10, %11 : vector<8x128xf32>
    %13 = arith.select %7, %5, %12 : vector<8x128xi1>, vector<8x128xf32>
    %c0_8 = arith.constant 0 : index
    %c0_9 = arith.constant 0 : index
    %14 = vector.load %arg5[%c0_8, %c0_9] : memref<128x64xf32, #tpu.memory_space<vmem>>, vector<128x64xf32>
    %cst_10 = arith.constant dense<0.000000e+00> : vector<8x64xf32>
    %15 = tpu.matmul %13, %14, %cst_10 {dimension_numbers = #tpu.dot_dimension_numbers<[1], [0], [0], [1], [0, 0, 1, 1], [], []>} : vector<8x128xf32>, vector<128x64xf32>, vector<8x64xf32> -> vector<8x64xf32>
    %c0_11 = arith.constant 0 : index
    %c0_12 = arith.constant 0 : index
    %16 = vector.load %arg6[%c0_11, %c0_12] : memref<1x64xf32, #tpu.memory_space<vmem>>, vector<1x64xf32>
    %17 = vector.broadcast %16 : vector<1x64xf32> to vector<8x64xf32>
    %18 = arith.addf %15, %17 : vector<8x64xf32>
    %cst_13 = arith.constant 0.000000e+00 : f32
    %19 = vector.broadcast %cst_13 : f32 to vector<8x64xf32>
    %20 = arith.cmpf ogt, %18, %19 : vector<8x64xf32>
    %cst_14 = arith.constant 0.000000e+00 : f32
    %21 = vector.broadcast %cst_14 : f32 to vector<8x64xf32>
    %22 = arith.minimumf %18, %21 : vector<8x64xf32>
    %23 = math.exp %22 : vector<8x64xf32>
    %cst_15 = arith.constant 1.000000e+00 : f32
    %24 = vector.broadcast %cst_15 : f32 to vector<8x64xf32>
    %25 = arith.subf %23, %24 : vector<8x64xf32>
    %26 = arith.select %20, %18, %25 : vector<8x64xi1>, vector<8x64xf32>
    %c0_16 = arith.constant 0 : index
    %c0_17 = arith.constant 0 : index
    %27 = vector.load %arg7[%c0_16, %c0_17] : memref<64x64xf32, #tpu.memory_space<vmem>>, vector<64x64xf32>
    %cst_18 = arith.constant dense<0.000000e+00> : vector<8x64xf32>
    %28 = tpu.matmul %26, %27, %cst_18 {dimension_numbers = #tpu.dot_dimension_numbers<[1], [0], [0], [1], [0, 0, 1, 1], [], []>} : vector<8x64xf32>, vector<64x64xf32>, vector<8x64xf32> -> vector<8x64xf32>
    %c0_19 = arith.constant 0 : index
    %c0_20 = arith.constant 0 : index
    %29 = vector.load %arg8[%c0_19, %c0_20] : memref<1x64xf32, #tpu.memory_space<vmem>>, vector<1x64xf32>
    %30 = vector.broadcast %29 : vector<1x64xf32> to vector<8x64xf32>
    %31 = arith.addf %28, %30 : vector<8x64xf32>
    %cst_21 = arith.constant 0.000000e+00 : f32
    %32 = vector.broadcast %cst_21 : f32 to vector<8x64xf32>
    %33 = arith.cmpf ogt, %31, %32 : vector<8x64xf32>
    %cst_22 = arith.constant 0.000000e+00 : f32
    %34 = vector.broadcast %cst_22 : f32 to vector<8x64xf32>
    %35 = arith.minimumf %31, %34 : vector<8x64xf32>
    %36 = math.exp %35 : vector<8x64xf32>
    %cst_23 = arith.constant 1.000000e+00 : f32
    %37 = vector.broadcast %cst_23 : f32 to vector<8x64xf32>
    %38 = arith.subf %36, %37 : vector<8x64xf32>
    %39 = arith.select %33, %31, %38 : vector<8x64xi1>, vector<8x64xf32>
    %c0_24 = arith.constant 0 : index
    %c0_25 = arith.constant 0 : index
    %40 = vector.load %arg9[%c0_24, %c0_25] : memref<64x8xf32, #tpu.memory_space<vmem>>, vector<64x8xf32>
    %cst_26 = arith.constant dense<0.000000e+00> : vector<8x8xf32>
    %41 = tpu.matmul %39, %40, %cst_26 {dimension_numbers = #tpu.dot_dimension_numbers<[1], [0], [0], [1], [0, 0, 1, 1], [], []>} : vector<8x64xf32>, vector<64x8xf32>, vector<8x8xf32> -> vector<8x8xf32>
    %c0_27 = arith.constant 0 : index
    %c0_28 = arith.constant 0 : index
    %42 = vector.load %arg10[%c0_27, %c0_28] : memref<1x8xf32, #tpu.memory_space<vmem>>, vector<1x8xf32>
    %43 = vector.broadcast %42 : vector<1x8xf32> to vector<8x8xf32>
    %44 = arith.addf %41, %43 : vector<8x8xf32>
    %45 = math.tanh %44 : vector<8x8xf32>
    %c0_29 = arith.constant 0 : index
    %c0_30 = arith.constant 0 : index
    %46 = vector.load %arg2[%c0_29, %c0_30] : memref<8x8xf32, #tpu.memory_space<vmem>>, vector<8x8xf32>
    %c0_31 = arith.constant 0 : index
    %c0_32 = arith.constant 0 : index
    %47 = vector.load %arg11[%c0_31, %c0_32] : memref<1x8xf32, #tpu.memory_space<vmem>>, vector<1x8xf32>
    %48 = vector.broadcast %47 : vector<1x8xf32> to vector<8x8xf32>
    %49 = arith.mulf %48, %46 : vector<8x8xf32>
    %50 = arith.addf %45, %49 : vector<8x8xf32>
    %51 = arith.mulf %46, %46 : vector<8x8xf32>
    %cst_33 = arith.constant dense<0.000000e+00> : vector<8xf32>
    %52 = vector.multi_reduction <add>, %51, %cst_33 [1] : vector<8x8xf32> to vector<8xf32>
    %53 = vector.shape_cast %52 : vector<8xf32> to vector<8x1xf32>
    %cst_34 = arith.constant -5.000000e-01 : f32
    %54 = vector.broadcast %cst_34 : f32 to vector<8x1xf32>
    %55 = arith.mulf %54, %53 : vector<8x1xf32>
    %c0_35 = arith.constant 0 : index
    %c0_36 = arith.constant 0 : index
    %56 = vector.load %arg12[%c0_35, %c0_36] : memref<1x1xf32, #tpu.memory_space<vmem>>, vector<1x1xf32>
    %57 = vector.broadcast %56 : vector<1x1xf32> to vector<8x1xf32>
    %58 = arith.addf %55, %57 : vector<8x1xf32>
    %c0_37 = arith.constant 0 : index
    %c0_38 = arith.constant 0 : index
    %59 = vector.load %arg13[%c0_37, %c0_38] : memref<8x8xf32, #tpu.memory_space<vmem>>, vector<8x8xf32>
    tpu.vector_store %arg13[%c0_37, %c0_38], %50 {strides = array<i32>} : memref<8x8xf32, #tpu.memory_space<vmem>>, vector<8x8xf32>,
    %c0_39 = arith.constant 0 : index
    %c0_40 = arith.constant 0 : index
    %60 = vector.load %arg14[%c0_39, %c0_40] : memref<8x8xf32, #tpu.memory_space<vmem>>, vector<8x8xf32>
    tpu.vector_store %arg14[%c0_39, %c0_40], %45 {strides = array<i32>} : memref<8x8xf32, #tpu.memory_space<vmem>>, vector<8x8xf32>,
    %c0_41 = arith.constant 0 : index
    %c0_42 = arith.constant 0 : index
    %61 = vector.load %arg15[%c0_41, %c0_42] : memref<8x1xf32, #tpu.memory_space<vmem>>, vector<8x1xf32>
    tpu.vector_store %arg15[%c0_41, %c0_42], %58 {strides = array<i32>} : memref<8x1xf32, #tpu.memory_space<vmem>>, vector<8x1xf32>,
    return
  }
  func.func @transform_0(%arg0: i32) -> (i32, i32) {
    %c0_i32 = arith.constant 0 : i32
    %c0_i32_0 = arith.constant 0 : i32
    return %arg0, %c0_i32 : i32, i32
  }
  func.func @transform_1(%arg0: i32) -> (i32, i32) {
    %c0_i32 = arith.constant 0 : i32
    %c0_i32_0 = arith.constant 0 : i32
    return %arg0, %c0_i32 : i32, i32
  }
  func.func @transform_2(%arg0: i32) -> (i32, i32) {
    %c0_i32 = arith.constant 0 : i32
    %c0_i32_0 = arith.constant 0 : i32
    %c0_i32_1 = arith.constant 0 : i32
    return %c0_i32, %c0_i32_0 : i32, i32
  }
  func.func @transform_3(%arg0: i32) -> (i32, i32) {
    %c0_i32 = arith.constant 0 : i32
    %c0_i32_0 = arith.constant 0 : i32
    %c0_i32_1 = arith.constant 0 : i32
    return %c0_i32, %c0_i32_0 : i32, i32
  }
  func.func @transform_4(%arg0: i32) -> (i32, i32) {
    %c0_i32 = arith.constant 0 : i32
    %c0_i32_0 = arith.constant 0 : i32
    %c0_i32_1 = arith.constant 0 : i32
    return %c0_i32, %c0_i32_0 : i32, i32
  }
  func.func @transform_5(%arg0: i32) -> (i32, i32) {
    %c0_i32 = arith.constant 0 : i32
    %c0_i32_0 = arith.constant 0 : i32
    %c0_i32_1 = arith.constant 0 : i32
    return %c0_i32, %c0_i32_0 : i32, i32
  }
  func.func @transform_6(%arg0: i32) -> (i32, i32) {
    %c0_i32 = arith.constant 0 : i32
    %c0_i32_0 = arith.constant 0 : i32
    %c0_i32_1 = arith.constant 0 : i32
    return %c0_i32, %c0_i32_0 : i32, i32
  }
  func.func @transform_7(%arg0: i32) -> (i32, i32) {
    %c0_i32 = arith.constant 0 : i32
    %c0_i32_0 = arith.constant 0 : i32
    %c0_i32_1 = arith.constant 0 : i32
    return %c0_i32, %c0_i32_0 : i32, i32
  }
  func.func @transform_8(%arg0: i32) -> (i32, i32) {
    %c0_i32 = arith.constant 0 : i32
    %c0_i32_0 = arith.constant 0 : i32
    %c0_i32_1 = arith.constant 0 : i32
    return %c0_i32, %c0_i32_0 : i32, i32
  }
  func.func @transform_9(%arg0: i32) -> (i32, i32) {
    %c0_i32 = arith.constant 0 : i32
    %c0_i32_0 = arith.constant 0 : i32
    %c0_i32_1 = arith.constant 0 : i32
    return %c0_i32, %c0_i32_0 : i32, i32
  }
  func.func @transform_10(%arg0: i32) -> (i32, i32) {
    %c0_i32 = arith.constant 0 : i32
    %c0_i32_0 = arith.constant 0 : i32
    %c0_i32_1 = arith.constant 0 : i32
    return %c0_i32, %c0_i32_0 : i32, i32
  }
  func.func @transform_11(%arg0: i32) -> (i32, i32) {
    %c0_i32 = arith.constant 0 : i32
    %c0_i32_0 = arith.constant 0 : i32
    %c0_i32_1 = arith.constant 0 : i32
    return %c0_i32, %c0_i32_0 : i32, i32
  }
  func.func @transform_12(%arg0: i32) -> (i32, i32) {
    %c0_i32 = arith.constant 0 : i32
    %c0_i32_0 = arith.constant 0 : i32
    return %arg0, %c0_i32 : i32, i32
  }
  func.func @transform_13(%arg0: i32) -> (i32, i32) {
    %c0_i32 = arith.constant 0 : i32
    %c0_i32_0 = arith.constant 0 : i32
    return %arg0, %c0_i32 : i32, i32
  }
  func.func @transform_14(%arg0: i32) -> (i32, i32) {
    %c0_i32 = arith.constant 0 : i32
    %c0_i32_0 = arith.constant 0 : i32
    return %arg0, %c0_i32 : i32, i32
  }
}

</mosaic_0001>

<llo_original>
// kernel: tpu_custom_call.1
$region0: #{tpu_custom_call.1}
  #allocation0 [shape = 'u32[]', space=smem, size = 0x4, offset = 0x4, fixed_abs, tag = 'smem constant byte address 0x4 - core index']
  #allocation1 [shape = 'u32[144,128]{1,0:T(1,128)}', space=vmem, size = 0x12000, scoped, tag = 'internal scratch']
  #allocation2 [shape = 'f32[1,1]{1,0:T(1,128)S(1)}', space=vmem, size = 0x200, scoped, tag = 'scoped memory for tpu_custom_call.1']
  %s0 = inlined_call_operand.vmem [shape: f32[8,32], index: 0, kind: input, shape index: {}]
  %s1 = inlined_call_operand.vmem [shape: f32[8,8], index: 1, kind: input, shape index: {}]
  %s2 = inlined_call_operand.vmem [shape: f32[32,128], index: 2, kind: input, shape index: {}]
  %s3 = inlined_call_operand.vmem [shape: f32[1,128], index: 3, kind: input, shape index: {}]
  %s4 = inlined_call_operand.vmem [shape: f32[128,64], index: 4, kind: input, shape index: {}]
  %s5 = inlined_call_operand.vmem [shape: f32[1,64], index: 5, kind: input, shape index: {}]
  %s6 = inlined_call_operand.vmem [shape: f32[64,64], index: 6, kind: input, shape index: {}]
  %s7 = inlined_call_operand.vmem [shape: f32[1,64], index: 7, kind: input, shape index: {}]
  %s8 = inlined_call_operand.vmem [shape: f32[64,8], index: 8, kind: input, shape index: {}]
  %s9 = inlined_call_operand.vmem [shape: f32[1,8], index: 9, kind: input, shape index: {}]
  %s10 = inlined_call_operand.vmem [shape: f32[1,8], index: 10, kind: input, shape index: {}]
  %s11 = inlined_call_operand.<no memory space> [shape: f32[1,1], index: 11, kind: input, shape index: {}]
  %s12 = inlined_call_operand.hbm [shape: f32[8,8], index: 12, kind: output, shape index: {0}]
  %s13 = inlined_call_operand.hbm [shape: f32[8,8], index: 13, kind: output, shape index: {1}]
  %s14 = inlined_call_operand.vmem [shape: f32[8,1], index: 14, kind: output, shape index: {2}]
  %15 = xla_tuple %s12, %s13, %s14
  %s16 = sld [smem:[#allocation0]]
  $region74: #{tpu_custom_call.1} parent=0
    _
  %s18 = ssub.s32 1, %s16
  %s19 = scalar_select 0, %s18, %s16
  %v20 = vstv %s11
  %21 = vst [vmem:[#allocation2] sm:$0x1] %v20
  $region1: #{tpu_custom_call.1} parent=0
    #allocation3 [shape = 'u8[4096]{0}', space=vmem, size = 0x1000, scoped, tag = 'output window, operand 0, single buffered']
    #allocation4 [shape = 's32[1]{0}', space=sflag, size = 0x4, scoped, tag = 'scoped memory for tpu_custom_call.1']
    #allocation5 [shape = 'u8[4096]{0}', space=vmem, size = 0x1000, scoped, tag = 'output window, operand 1, single buffered']
    #allocation6 [shape = 's32[1]{0}', space=sflag, size = 0x4, scoped, tag = 'scoped memory for tpu_custom_call.1']
    %22 = vsyncpa [#allocation4], 0
    %23 = vsyncpa [#allocation6], 0
    // Predicated region
    $region2: #{tpu_custom_call.1} parent=1 // pred_check
      _
    $region3: #{tpu_custom_call.1} parent=1 // pred_check_branch
      %25 = sbr.rel (0) target = $region5
    $region4: #{tpu_custom_call.1} parent=1 // pred_region
      _
    $region5: #{tpu_custom_call.1} parent=1 // pred_fallthru
      _
    // Predicated region
    $region6: #{tpu_custom_call.1} parent=1 // pred_check
      _
    $region7: #{tpu_custom_call.1} parent=1 // pred_check_branch
      %27 = sbr.rel (0) target = $region9
    $region8: #{tpu_custom_call.1} parent=1 // pred_region
      _
    $region9: #{tpu_custom_call.1} parent=1 // pred_fallthru
      _
    // Predicated region
    $region10: #{tpu_custom_call.1} parent=1 // pred_check
      _
    $region11: #{tpu_custom_call.1} parent=1 // pred_check_branch
      %29 = sbr.rel (0) target = $region13
    $region12: #{tpu_custom_call.1} parent=1 // pred_region
      _
    $region13: #{tpu_custom_call.1} parent=1 // pred_fallthru
      _
    // Predicated region
    $region14: #{tpu_custom_call.1} parent=1 // pred_check
      _
    $region15: #{tpu_custom_call.1} parent=1 // pred_check_branch
      %31 = sbr.rel (0) target = $region17
    $region16: #{tpu_custom_call.1} parent=1 // pred_region
      _
    $region17: #{tpu_custom_call.1} parent=1 // pred_fallthru
      _
    // Predicated region
    $region18: #{tpu_custom_call.1} parent=1 // pred_check
      _
    $region19: #{tpu_custom_call.1} parent=1 // pred_check_branch
      %33 = sbr.rel (0) target = $region21
    $region20: #{tpu_custom_call.1} parent=1 // pred_region
      _
    $region21: #{tpu_custom_call.1} parent=1 // pred_fallthru
      _
    // Predicated region
    $region22: #{tpu_custom_call.1} parent=1 // pred_check
      _
    $region23: #{tpu_custom_call.1} parent=1 // pred_check_branch
      %35 = sbr.rel (0) target = $region25
    $region24: #{tpu_custom_call.1} parent=1 // pred_region
      _
    $region25: #{tpu_custom_call.1} parent=1 // pred_fallthru
      _
    // Predicated region
    $region26: #{tpu_custom_call.1} parent=1 // pred_check
      _
    $region27: #{tpu_custom_call.1} parent=1 // pred_check_branch
      %37 = sbr.rel (0) target = $region29
    $region28: #{tpu_custom_call.1} parent=1 // pred_region
      _
    $region29: #{tpu_custom_call.1} parent=1 // pred_fallthru
      _
    // Predicated region
    $region30: #{tpu_custom_call.1} parent=1 // pred_check
      _
    $region31: #{tpu_custom_call.1} parent=1 // pred_check_branch
      %39 = sbr.rel (0) target = $region33
    $region32: #{tpu_custom_call.1} parent=1 // pred_region
      _
    $region33: #{tpu_custom_call.1} parent=1 // pred_fallthru
      _
    // Predicated region
    $region34: #{tpu_custom_call.1} parent=1 // pred_check
      _
    $region35: #{tpu_custom_call.1} parent=1 // pred_check_branch
      %41 = sbr.rel (0) target = $region37
    $region36: #{tpu_custom_call.1} parent=1 // pred_region
      _
    $region37: #{tpu_custom_call.1} parent=1 // pred_fallthru
      _
    // Predicated region
    $region38: #{tpu_custom_call.1} parent=1 // pred_check
      _
    $region39: #{tpu_custom_call.1} parent=1 // pred_check_branch
      %43 = sbr.rel (0) target = $region41
    $region40: #{tpu_custom_call.1} parent=1 // pred_region
      _
    $region41: #{tpu_custom_call.1} parent=1 // pred_fallthru
      _
    // Predicated region
    $region42: #{tpu_custom_call.1} parent=1 // pred_check
      _
    $region43: #{tpu_custom_call.1} parent=1 // pred_check_branch
      %45 = sbr.rel (0) target = $region45
    $region44: #{tpu_custom_call.1} parent=1 // pred_region
      _
    $region45: #{tpu_custom_call.1} parent=1 // pred_fallthru
      _
    // Predicated region
    $region46: #{tpu_custom_call.1} parent=1 // pred_check
      _
    $region47: #{tpu_custom_call.1} parent=1 // pred_check_branch
      %47 = sbr.rel (0) target = $region49
    $region48: #{tpu_custom_call.1} parent=1 // pred_region
      _
    $region49: #{tpu_custom_call.1} parent=1 // pred_fallthru
      _
    %v48 = vld [vmem:[%s0] sm:$0xff]
    %v49 = vld [vmem:[%s2] sm:$0xff]
    %v50 = vld [vmem:[%s2 + $0x8] sm:$0xff]
    %v51 = vld [vmem:[%s2 + $0x10] sm:$0xff]
    %v52 = vld [vmem:[%s2 + $0x18] sm:$0xff]
    %v53 = vld [vmem:[%s3] sm:$0x1]
    %v55 = vlaneseq
    %v56 = vshrl.u32 %v55, 7
    %v57 = vsub.s32 0, %v56
    %v58 = vrot.slane %v53, %v57
    %vm60 = vcmask 261120
    %v62 = vsel %vm60, %v48, 0
    %64 = vmatprep.subr.mxu0 0.0
    %65 = vmatpush1.msra.mxu0 %v49
    %66 = vmatprep.subr.mxu0 0.0
    %67 = vmatpush1.msra.mxu0 %v50
    %68 = vmatprep.subr.mxu0 0.0
    %69 = vmatpush1.msra.mxu0 %v51
    %70 = vmatprep.subr.mxu0 0.0
    %71 = vmatpush1.msra.mxu0 %v52
    %72 = vmatprep.subr.mxu0 0.0
    %73 = vmatpush1.msra.mxu0 0.0
    %74 = vmatprep.subr.mxu0 0.0
    %75 = vmatpush1.msra.mxu0 0.0
    %76 = vmatprep.subr.mxu0 0.0
    %77 = vmatpush1.msra.mxu0 0.0
    %78 = vmatprep.subr.mxu0 0.0
    %79 = vmatpush1.msra.mxu0 0.0
    %80 = vmatprep.subr.mxu0 0.0
    %81 = vmatpush1.msra.mxu0 0.0
    %82 = vmatprep.subr.mxu0 0.0
    %83 = vmatpush1.msra.mxu0 0.0
    %84 = vmatprep.subr.mxu0 0.0
    %85 = vmatpush1.msra.mxu0 0.0
    %86 = vmatprep.subr.mxu0 0.0
    %87 = vmatpush1.msra.mxu0 0.0
    %88 = vmatprep.subr.mxu0 0.0
    %89 = vmatpush1.msra.mxu0 0.0
    %90 = vmatprep.subr.mxu0 0.0
    %91 = vmatpush1.msra.mxu0 0.0
    %92 = vmatprep.subr.mxu0 0.0
    %93 = vmatpush1.msra.mxu0 0.0
    %94 = vmatprep.subr.mxu0 0.0
    %95 = vmatpush1.msra.mxu0 0.0
    %96 = vmatprep.subr.mxu0 0.0
    %97 = vmatpush1.msra.mxu0 0.0
    %98 = vmatprep.subr.mxu0 0.0
    %99 = vmatpush1.msra.mxu0 0.0
    %100 = vmatprep.subr.mxu0 0.0
    %101 = vmatpush1.msra.mxu0 0.0
    %102 = vmatprep.subr.mxu0 0.0
    %103 = vmatpush1.msra.mxu0 0.0
    %104 = vmatprep.subr.mxu0 0.0
    %105 = vmatpush1.msra.mxu0 0.0
    %106 = vmatprep.subr.mxu0 0.0
    %107 = vmatpush1.msra.mxu0 0.0
    %108 = vmatprep.subr.mxu0 0.0
    %109 = vmatpush1.msra.mxu0 0.0
    %110 = vmatprep.subr.mxu0 0.0
    %111 = vmatpush1.msra.mxu0 0.0
    %112 = vmatprep.subr.mxu0 0.0
    %113 = vmatpush1.msra.mxu0 0.0
    %114 = vmatprep.subr.mxu0 0.0
    %115 = vmatpush1.msra.mxu0 0.0
    %116 = vmatprep.subr.mxu0 0.0
    %117 = vmatpush1.msra.mxu0 0.0
    %118 = vmatprep.subr.mxu0 0.0
    %119 = vmatpush1.msra.mxu0 0.0
    %120 = vmatprep.subr.mxu0 0.0
    %121 = vmatpush1.msra.mxu0 0.0
    %122 = vmatprep.subr.mxu0 0.0
    %123 = vmatpush1.msra.mxu0 0.0
    %124 = vmatprep.subr.mxu0 0.0
    %125 = vmatpush1.msra.mxu0 0.0
    %126 = vmatprep.subr.mxu0 0.0
    %127 = vmatpush1.msra.mxu0 0.0
    %128 = vmatprep.mubr.f32.mxu0 0.0
    %129 = vmatmul.mubr.f32.gmra.mrb[0].mxu0 %v62
    %v130 = vpop.f32.mrb[0].mxu0
    %v131 = vadd.f32 %v58, %v130
    %v132 = vpop.f32.mrb[0].mxu0
    %133 = vdwg.mxu0
    %vm134 = vcmp.gt.f32.partialorder %v131, 0.0
    %v135 = vmin.f32 %v131, 0.0
    %v136 = vmul.f32 %v135, 1.442695
    %v137 = vpow.pop %v136
    %v138 = vsub.f32 %v137, 1.0
    %v139 = vsel %vm134, %v131, %v138
    %v140 = vld [vmem:[%s4] sm:$0xff]
    %v141 = vld [vmem:[%s4 + $0x8] sm:$0xff]
    %v142 = vld [vmem:[%s4 + $0x10] sm:$0xff]
    %v143 = vld [vmem:[%s4 + $0x18] sm:$0xff]
    %v144 = vld [vmem:[%s4 + $0x20] sm:$0xff]
    %v145 = vld [vmem:[%s4 + $0x28] sm:$0xff]
    %v146 = vld [vmem:[%s4 + $0x30] sm:$0xff]
    %v147 = vld [vmem:[%s4 + $0x38] sm:$0xff]
    %v148 = vld [vmem:[%s4 + $0x40] sm:$0xff]
    %v149 = vld [vmem:[%s4 + $0x48] sm:$0xff]
    %v150 = vld [vmem:[%s4 + $0x50] sm:$0xff]
    %v151 = vld [vmem:[%s4 + $0x58] sm:$0xff]
    %v152 = vld [vmem:[%s4 + $0x60] sm:$0xff]
    %v153 = vld [vmem:[%s4 + $0x68] sm:$0xff]
    %v154 = vld [vmem:[%s4 + $0x70] sm:$0xff]
    %v155 = vld [vmem:[%s4 + $0x78] sm:$0xff]
    %v156 = vld [vmem:[%s5] sm:$0x1]
    %v158 = vlaneseq
    %v159 = vshrl.u32 %v158, 7
    %v160 = vsub.s32 0, %v159
    %v161 = vrot.slane %v156, %v160
    %163 = vmatprep.subr.mxu0 0.0
    %164 = vmatpush1.msra.mxu0 %v140
    %165 = vmatprep.subr.mxu0 0.0
    %166 = vmatpush1.msra.mxu0 %v141
    %167 = vmatprep.subr.mxu0 0.0
    %168 = vmatpush1.msra.mxu0 %v142
    %169 = vmatprep.subr.mxu0 0.0
    %170 = vmatpush1.msra.mxu0 %v143
    %171 = vmatprep.subr.mxu0 0.0
    %172 = vmatpush1.msra.mxu0 %v144
    %173 = vmatprep.subr.mxu0 0.0
    %174 = vmatpush1.msra.mxu0 %v145
    %175 = vmatprep.subr.mxu0 0.0
    %176 = vmatpush1.msra.mxu0 %v146
    %177 = vmatprep.subr.mxu0 0.0
    %178 = vmatpush1.msra.mxu0 %v147
    %179 = vmatprep.subr.mxu0 0.0
    %180 = vmatpush1.msra.mxu0 %v148
    %181 = vmatprep.subr.mxu0 0.0
    %182 = vmatpush1.msra.mxu0 %v149
    %183 = vmatprep.subr.mxu0 0.0
    %184 = vmatpush1.msra.mxu0 %v150
    %185 = vmatprep.subr.mxu0 0.0
    %186 = vmatpush1.msra.mxu0 %v151
    %187 = vmatprep.subr.mxu0 0.0
    %188 = vmatpush1.msra.mxu0 %v152
    %189 = vmatprep.subr.mxu0 0.0
    %190 = vmatpush1.msra.mxu0 %v153
    %191 = vmatprep.subr.mxu0 0.0
    %192 = vmatpush1.msra.mxu0 %v154
    %193 = vmatprep.subr.mxu0 0.0
    %194 = vmatpush1.msra.mxu0 %v155
    %195 = vmatprep.subr.mxu0 0.0
    %196 = vmatpush1.msra.mxu0 0.0
    %197 = vmatprep.subr.mxu0 0.0
    %198 = vmatpush1.msra.mxu0 0.0
    %199 = vmatprep.subr.mxu0 0.0
    %200 = vmatpush1.msra.mxu0 0.0
    %201 = vmatprep.subr.mxu0 0.0
    %202 = vmatpush1.msra.mxu0 0.0
    %203 = vmatprep.subr.mxu0 0.0
    %204 = vmatpush1.msra.mxu0 0.0
    %205 = vmatprep.subr.mxu0 0.0
    %206 = vmatpush1.msra.mxu0 0.0
    %207 = vmatprep.subr.mxu0 0.0
    %208 = vmatpush1.msra.mxu0 0.0
    %209 = vmatprep.subr.mxu0 0.0
    %210 = vmatpush1.msra.mxu0 0.0
    %211 = vmatprep.subr.mxu0 0.0
    %212 = vmatpush1.msra.mxu0 0.0
    %213 = vmatprep.subr.mxu0 0.0
    %214 = vmatpush1.msra.mxu0 0.0
    %215 = vmatprep.subr.mxu0 0.0
    %216 = vmatpush1.msra.mxu0 0.0
    %217 = vmatprep.subr.mxu0 0.0
    %218 = vmatpush1.msra.mxu0 0.0
    %219 = vmatprep.subr.mxu0 0.0
    %220 = vmatpush1.msra.mxu0 0.0
    %221 = vmatprep.subr.mxu0 0.0
    %222 = vmatpush1.msra.mxu0 0.0
    %223 = vmatprep.subr.mxu0 0.0
    %224 = vmatpush1.msra.mxu0 0.0
    %225 = vmatprep.subr.mxu0 0.0
    %226 = vmatpush1.msra.mxu0 0.0
    %227 = vmatprep.mubr.f32.mxu0 0.0
    %228 = vmatmul.mubr.f32.gmra.mrb[0].mxu0 %v139
    %v229 = vpop.f32.mrb[0].mxu0
    %v230 = vadd.f32 %v161, %v229
    %v231 = vpop.f32.mrb[0].mxu0
    %232 = vdwg.mxu0
    %vm233 = vcmp.gt.f32.partialorder %v230, 0.0
    %v234 = vmin.f32 %v230, 0.0
    %v235 = vmul.f32 %v234, 1.442695
    %v236 = vpow.pop %v235
    %v237 = vsub.f32 %v236, 1.0
    %v238 = vsel %vm233, %v230, %v237
    %v239 = vld [vmem:[%s6] sm:$0xff]
    %v240 = vld [vmem:[%s6 + $0x8] sm:$0xff]
    %v241 = vld [vmem:[%s6 + $0x10] sm:$0xff]
    %v242 = vld [vmem:[%s6 + $0x18] sm:$0xff]
    %v243 = vld [vmem:[%s6 + $0x20] sm:$0xff]
    %v244 = vld [vmem:[%s6 + $0x28] sm:$0xff]
    %v245 = vld [vmem:[%s6 + $0x30] sm:$0xff]
    %v246 = vld [vmem:[%s6 + $0x38] sm:$0xff]
    %v247 = vld [vmem:[%s7] sm:$0x1]
    %v249 = vlaneseq
    %v250 = vshrl.u32 %v249, 7
    %v251 = vsub.s32 0, %v250
    %v252 = vrot.slane %v247, %v251
    %vm254 = vcmask 523264
    %v256 = vsel %vm254, %v238, 0
    %258 = vmatprep.subr.mxu0 0.0
    %259 = vmatpush1.msra.mxu0 %v239
    %260 = vmatprep.subr.mxu0 0.0
    %261 = vmatpush1.msra.mxu0 %v240
    %262 = vmatprep.subr.mxu0 0.0
    %263 = vmatpush1.msra.mxu0 %v241
    %264 = vmatprep.subr.mxu0 0.0
    %265 = vmatpush1.msra.mxu0 %v242
    %266 = vmatprep.subr.mxu0 0.0
    %267 = vmatpush1.msra.mxu0 %v243
    %268 = vmatprep.subr.mxu0 0.0
    %269 = vmatpush1.msra.mxu0 %v244
    %270 = vmatprep.subr.mxu0 0.0
    %271 = vmatpush1.msra.mxu0 %v245
    %272 = vmatprep.subr.mxu0 0.0
    %273 = vmatpush1.msra.mxu0 %v246
    %274 = vmatprep.subr.mxu0 0.0
    %275 = vmatpush1.msra.mxu0 0.0
    %276 = vmatprep.subr.mxu0 0.0
    %277 = vmatpush1.msra.mxu0 0.0
    %278 = vmatprep.subr.mxu0 0.0
    %279 = vmatpush1.msra.mxu0 0.0
    %280 = vmatprep.subr.mxu0 0.0
    %281 = vmatpush1.msra.mxu0 0.0
    %282 = vmatprep.subr.mxu0 0.0
    %283 = vmatpush1.msra.mxu0 0.0
    %284 = vmatprep.subr.mxu0 0.0
    %285 = vmatpush1.msra.mxu0 0.0
    %286 = vmatprep.subr.mxu0 0.0
    %287 = vmatpush1.msra.mxu0 0.0
    %288 = vmatprep.subr.mxu0 0.0
    %289 = vmatpush1.msra.mxu0 0.0
    %290 = vmatprep.subr.mxu0 0.0
    %291 = vmatpush1.msra.mxu0 0.0
    %292 = vmatprep.subr.mxu0 0.0
    %293 = vmatpush1.msra.mxu0 0.0
    %294 = vmatprep.subr.mxu0 0.0
    %295 = vmatpush1.msra.mxu0 0.0
    %296 = vmatprep.subr.mxu0 0.0
    %297 = vmatpush1.msra.mxu0 0.0
    %298 = vmatprep.subr.mxu0 0.0
    %299 = vmatpush1.msra.mxu0 0.0
    %300 = vmatprep.subr.mxu0 0.0
    %301 = vmatpush1.msra.mxu0 0.0
    %302 = vmatprep.subr.mxu0 0.0
    %303 = vmatpush1.msra.mxu0 0.0
    %304 = vmatprep.subr.mxu0 0.0
    %305 = vmatpush1.msra.mxu0 0.0
    %306 = vmatprep.subr.mxu0 0.0
    %307 = vmatpush1.msra.mxu0 0.0
    %308 = vmatprep.subr.mxu0 0.0
    %309 = vmatpush1.msra.mxu0 0.0
    %310 = vmatprep.subr.mxu0 0.0
    %311 = vmatpush1.msra.mxu0 0.0
    %312 = vmatprep.subr.mxu0 0.0
    %313 = vmatpush1.msra.mxu0 0.0
    %314 = vmatprep.subr.mxu0 0.0
    %315 = vmatpush1.msra.mxu0 0.0
    %316 = vmatprep.subr.mxu0 0.0
    %317 = vmatpush1.msra.mxu0 0.0
    %318 = vmatprep.subr.mxu0 0.0
    %319 = vmatpush1.msra.mxu0 0.0
    %320 = vmatprep.subr.mxu0 0.0
    %321 = vmatpush1.msra.mxu0 0.0
    %322 = vmatprep.mubr.f32.mxu0 0.0
    %323 = vmatmul.mubr.f32.gmra.mrb[0].mxu0 %v256
    %v324 = vpop.f32.mrb[0].mxu0
    %v325 = vadd.f32 %v252, %v324
    %v326 = vpop.f32.mrb[0].mxu0
    %327 = vdwg.mxu0
    %vm328 = vcmp.gt.f32.partialorder %v325, 0.0
    %v329 = vmin.f32 %v325, 0.0
    %v330 = vmul.f32 %v329, 1.442695
    %v331 = vpow.pop %v330
    %v332 = vsub.f32 %v331, 1.0
    %v333 = vsel %vm328, %v325, %v332
    %v334 = vld [vmem:[%s8] sm:$0xff]
    %v335 = vld [vmem:[%s8 + $0x8] sm:$0xff]
    %v336 = vld [vmem:[%s8 + $0x10] sm:$0xff]
    %v337 = vld [vmem:[%s8 + $0x18] sm:$0xff]
    %v338 = vld [vmem:[%s8 + $0x20] sm:$0xff]
    %v339 = vld [vmem:[%s8 + $0x28] sm:$0xff]
    %v340 = vld [vmem:[%s8 + $0x30] sm:$0xff]
    %v341 = vld [vmem:[%s8 + $0x38] sm:$0xff]
    %v342 = vld [vmem:[%s9] sm:$0x1]
    %v344 = vlaneseq
    %v345 = vshrl.u32 %v344, 7
    %v346 = vsub.s32 0, %v345
    %v347 = vrot.slane %v342, %v346
    %v350 = vsel %vm254, %v333, 0
    %352 = vmatprep.subr.mxu0 0.0
    %353 = vmatpush1.msra.mxu0 %v334
    %354 = vmatprep.subr.mxu0 0.0
    %355 = vmatpush1.msra.mxu0 %v335
    %356 = vmatprep.subr.mxu0 0.0
    %357 = vmatpush1.msra.mxu0 %v336
    %358 = vmatprep.subr.mxu0 0.0
    %359 = vmatpush1.msra.mxu0 %v337
    %360 = vmatprep.subr.mxu0 0.0
    %361 = vmatpush1.msra.mxu0 %v338
    %362 = vmatprep.subr.mxu0 0.0
    %363 = vmatpush1.msra.mxu0 %v339
    %364 = vmatprep.subr.mxu0 0.0
    %365 = vmatpush1.msra.mxu0 %v340
    %366 = vmatprep.subr.mxu0 0.0
    %367 = vmatpush1.msra.mxu0 %v341
    %368 = vmatprep.subr.mxu0 0.0
    %369 = vmatpush1.msra.mxu0 0.0
    %370 = vmatprep.subr.mxu0 0.0
    %371 = vmatpush1.msra.mxu0 0.0
    %372 = vmatprep.subr.mxu0 0.0
    %373 = vmatpush1.msra.mxu0 0.0
    %374 = vmatprep.subr.mxu0 0.0
    %375 = vmatpush1.msra.mxu0 0.0
    %376 = vmatprep.subr.mxu0 0.0
    %377 = vmatpush1.msra.mxu0 0.0
    %378 = vmatprep.subr.mxu0 0.0
    %379 = vmatpush1.msra.mxu0 0.0
    %380 = vmatprep.subr.mxu0 0.0
    %381 = vmatpush1.msra.mxu0 0.0
    %382 = vmatprep.subr.mxu0 0.0
    %383 = vmatpush1.msra.mxu0 0.0
    %384 = vmatprep.subr.mxu0 0.0
    %385 = vmatpush1.msra.mxu0 0.0
    %386 = vmatprep.subr.mxu0 0.0
    %387 = vmatpush1.msra.mxu0 0.0
    %388 = vmatprep.subr.mxu0 0.0
    %389 = vmatpush1.msra.mxu0 0.0
    %390 = vmatprep.subr.mxu0 0.0
    %391 = vmatpush1.msra.mxu0 0.0
    %392 = vmatprep.subr.mxu0 0.0
    %393 = vmatpush1.msra.mxu0 0.0
    %394 = vmatprep.subr.mxu0 0.0
    %395 = vmatpush1.msra.mxu0 0.0
    %396 = vmatprep.subr.mxu0 0.0
    %397 = vmatpush1.msra.mxu0 0.0
    %398 = vmatprep.subr.mxu0 0.0
    %399 = vmatpush1.msra.mxu0 0.0
    %400 = vmatprep.subr.mxu0 0.0
    %401 = vmatpush1.msra.mxu0 0.0
    %402 = vmatprep.subr.mxu0 0.0
    %403 = vmatpush1.msra.mxu0 0.0
    %404 = vmatprep.subr.mxu0 0.0
    %405 = vmatpush1.msra.mxu0 0.0
    %406 = vmatprep.subr.mxu0 0.0
    %407 = vmatpush1.msra.mxu0 0.0
    %408 = vmatprep.subr.mxu0 0.0
    %409 = vmatpush1.msra.mxu0 0.0
    %410 = vmatprep.subr.mxu0 0.0
    %411 = vmatpush1.msra.mxu0 0.0
    %412 = vmatprep.subr.mxu0 0.0
    %413 = vmatpush1.msra.mxu0 0.0
    %414 = vmatprep.subr.mxu0 0.0
    %415 = vmatpush1.msra.mxu0 0.0
    %416 = vmatprep.mubr.f32.mxu0 0.0
    %417 = vmatmul.mubr.f32.gmra.mrb[0].mxu0 %v350
    %v418 = vpop.f32.mrb[0].mxu0
    %v419 = vadd.f32 %v347, %v418
    %v420 = vpop.f32.mrb[0].mxu0
    %421 = vdwg.mxu0
    %v422 = vtanh.pop %v419
    %v423 = vld [vmem:[%s1] sm:$0xff]
    %v424 = vld [vmem:[%s10] sm:$0x1]
    %v426 = vlaneseq
    %v427 = vshrl.u32 %v426, 7
    %v428 = vsub.s32 0, %v427
    %v429 = vrot.slane %v424, %v428
    %v431 = vmul.f32 %v429, %v423
    %v432 = vadd.f32 %v422, %v431
    %v433 = vmul.f32 %v423, %v423
    %vm434 = vcmask 64512
    %v435 = vsel %vm434, %v433, 0.0
    %436 = vadd.xlane.f32.xlu0 %v435
    %v437 = vpop.xlane.xlu0 %436
    %v438 = vmul.f32 %v437, -0.5
    %v439 = vld [vmem:[#allocation2] sm:$0x1]
    %v441 = vlaneseq
    %v442 = vshrl.u32 %v441, 7
    %v443 = vsub.s32 0, %v442
    %v444 = vrot.slane %v439, %v443
    %v446 = vadd.f32 %v438, %v444
    %447 = vst.msk [vmem:[#allocation3] sm:$0xff] %vm434, %v432
    %448 = vst.msk [vmem:[#allocation5] sm:$0xff] %vm434, %v422
    %vm449 = vcmask 7168
    %450 = vst.msk [vmem:[%s14] sm:$0xff] %vm449, %v446
    // Predicated region
    $region50: #{tpu_custom_call.1} parent=1 // pred_check
      _
    $region51: #{tpu_custom_call.1} parent=1 // pred_check_branch
      %452 = sbr.rel (0) target = $region53
    $region52: #{tpu_custom_call.1} parent=1 // pred_region
      %s454 = ssub.s32 128, 128
      %455 = vsyncadd [#allocation4], %s454
      %s457 = sshll.u32 [#allocation3], 4
      %s458 = int_to_ptr.vmem [resolvable:$true] %s457
      %460 = dma.vmem_to_hbm [thread:$0]  %s458, 128, %s12, [#allocation4]
    $region53: #{tpu_custom_call.1} parent=1 // pred_fallthru
      _
    // Predicated region
    $region54: #{tpu_custom_call.1} parent=1 // pred_check
      _
    $region55: #{tpu_custom_call.1} parent=1 // pred_check_branch
      %462 = sbr.rel (0) target = $region57
    $region56: #{tpu_custom_call.1} parent=1 // pred_region
      %s464 = ssub.s32 128, 128
      %465 = vsyncadd [#allocation6], %s464
      %s467 = sshll.u32 [#allocation5], 4
      %s468 = int_to_ptr.vmem [resolvable:$true] %s467
      %470 = dma.vmem_to_hbm [thread:$0]  %s468, 128, %s13, [#allocation6]
    $region57: #{tpu_custom_call.1} parent=1 // pred_fallthru
      _
    // Predicated region
    $region58: #{tpu_custom_call.1} parent=1 // pred_check
      _
    $region59: #{tpu_custom_call.1} parent=1 // pred_check_branch
      %472 = sbr.rel (0) target = $region61
    $region60: #{tpu_custom_call.1} parent=1 // pred_region
      _
    $region61: #{tpu_custom_call.1} parent=1 // pred_fallthru
      _
    // Predicated region
    $region62: #{tpu_custom_call.1} parent=1 // pred_check
      _
    $region63: #{tpu_custom_call.1} parent=1 // pred_check_branch
      %474 = sbr.rel (0) target = $region65
    $region64: #{tpu_custom_call.1} parent=1 // pred_region
      %475 = dma.done [#allocation4], 128
    $region65: #{tpu_custom_call.1} parent=1 // pred_fallthru
      _
    // Predicated region
    $region66: #{tpu_custom_call.1} parent=1 // pred_check
      _
    $region67: #{tpu_custom_call.1} parent=1 // pred_check_branch
      %477 = sbr.rel (0) target = $region69
    $region68: #{tpu_custom_call.1} parent=1 // pred_region
      %478 = dma.done [#allocation6], 128
    $region69: #{tpu_custom_call.1} parent=1 // pred_fallthru
      _
    // Predicated region
    $region70: #{tpu_custom_call.1} parent=1 // pred_check
      _
    $region71: #{tpu_custom_call.1} parent=1 // pred_check_branch
      %480 = sbr.rel (0) target = $region73
    $region72: #{tpu_custom_call.1} parent=1 // pred_region
      _
    $region73: #{tpu_custom_call.1} parent=1 // pred_fallthru
      _
    %481 = vsyncpa [#allocation4], 1
    %482 = vsyncpa [#allocation6], 1

</llo_original>
